<compile_context>
chip_gen: v7x
topology: tpu7x:2x2x1
jax: 0.10.0
libtpu: 0.0.40
codegen_flags: <defaults>
</compile_context>

<pallas_src>
import functools

import jax
import jax.numpy as jnp
from jax.experimental import pallas as pl
from jax.experimental.pallas import tpu as pltpu


def _jacc_kernel(logits_ref, labels_ref, inter_ref, card_ref, *, hw, tile_hw):
    x = logits_ref[...].astype(jnp.float32)     # (C, TH), classes on sublanes
    lbl = labels_ref[...].astype(jnp.int32)     # (1, TH), lane-dense labels
    c, th = x.shape
    cls = jax.lax.broadcasted_iota(jnp.int32, (c, 1), 0)   # class ids (C, 1)

    def accumulate(valid):
        xx = x if valid is None else jnp.where(valid, x, 0.0)
        # Softmax over the class (sublane) axis; single reciprocal per lane.
        m = jnp.max(xx, axis=0, keepdims=True)
        e = jnp.exp(xx - m)
        inv = 1.0 / jnp.sum(e, axis=0, keepdims=True)
        p = e * inv
        # One-hot as a mask-select (never materialized as floats).
        match = cls == lbl                       # (C, TH) via broadcast
        if valid is not None:
            p = jnp.where(valid, p, 0.0)
            match = jnp.logical_and(match, valid)
        inter = jnp.sum(jnp.where(match, p, 0.0), axis=-1, keepdims=True)
        card = jnp.sum(jnp.where(match, p + 1.0, p), axis=-1, keepdims=True)
        inter_ref[...] = inter                   # (C, 1) per-tile partials
        card_ref[...] = card

    if hw % tile_hw == 0:
        # No ragged tiles anywhere -> no masking code emitted at all.
        accumulate(None)
    else:
        t = pl.program_id(1)
        last = pl.num_programs(1) - 1

        @pl.when(t < last)
        def _():
            accumulate(None)

        @pl.when(t == last)
        def _():
            col = jax.lax.broadcasted_iota(jnp.int32, (1, th), 1)
            valid = col < (hw - last * tile_hw)
            accumulate(valid)


def jacc_loss(logits, true, eps=1e-7, tile_hw=None):
    """logits: [B, C, H, W]; true: [B, 1, H, W] or [B, H, W] integer labels."""
    B, C, H, W = logits.shape

    if C == 1:
        # Sigmoid branch of the reference module: softmax([x, 0]) equals
        # [sigmoid(x), 1 - sigmoid(x)], and torch pairs [pos, neg] probs with
        # one-hot [y == 1, y == 0]; remap y -> 1 - y and reuse the C=2 path.
        logits = jnp.concatenate([logits, jnp.zeros_like(logits)], axis=1)
        true = 1 - true.astype(jnp.int32)
        C = 2

    HW = H * W
    # Free reshapes (trailing dims only): no transpose, no HBM round trip.
    logits3 = logits.reshape(B, C, HW)
    labels = true.reshape(B, 1, HW)
    if not jnp.issubdtype(labels.dtype, jnp.integer):
        labels = labels.astype(jnp.int32)

    # ---- generation-aware tile / VMEM sizing -------------------------------
    try:
        vmem_cap = int(pltpu.get_tpu_info().vmem_capacity_bytes)
    except Exception:
        vmem_cap = 64 << 20                      # conservative (v7x per-core)

    itm = jnp.dtype(logits3.dtype).itemsize
    # Per lane-column VMEM cost: double-buffered logits+labels plus ~5 live
    # (C, tile) f32 temporaries in the kernel body.
    bytes_per_col = 2 * (C * itm + 4) + 5 * C * 4

    if tile_hw is None:
        budget = vmem_cap // 2
        max_cols = max(128, budget // bytes_per_col)
        max_cols = min(max_cols, 128 * 1024)     # already >> per-step overhead
        if HW <= max_cols:
            tile_hw = HW
        else:
            tile_hw = (max_cols // 128) * 128
            if HW % 128 == 0:
                # Prefer a tile that divides HW exactly (no ragged masking),
                # as long as it stays reasonably large.
                t = tile_hw
                floor = max(tile_hw // 2, 1024)
                while t >= floor:
                    if HW % t == 0:
                        tile_hw = t
                        break
                    t -= 128
    else:
        tile_hw = min(tile_hw, HW)
        if tile_hw < HW:
            tile_hw = max(128, (tile_hw // 128) * 128)

    num_tiles = pl.cdiv(HW, tile_hw)

    needed = (2 * (C * itm + 4) + 6 * C * 4) * tile_hw + (2 << 20)
    vmem_limit = int(min(int(0.9 * vmem_cap), max(needed, 32 << 20)))

    kernel = functools.partial(_jacc_kernel, hw=HW, tile_hw=tile_hw)

    cost = pl.CostEstimate(
        flops=12 * B * C * HW,
        transcendentals=B * C * HW,
        bytes_accessed=(logits3.size * itm
                        + labels.size * jnp.dtype(labels.dtype).itemsize
                        + 2 * B * num_tiles * C * 4))

    inter, card = pl.pallas_call(
        kernel,
        out_shape=(
            jax.ShapeDtypeStruct((B, num_tiles, C, 1), jnp.float32),
            jax.ShapeDtypeStruct((B, num_tiles, C, 1), jnp.float32),
        ),
        grid_spec=pltpu.PrefetchScalarGridSpec(
            num_scalar_prefetch=0,
            grid=(B, num_tiles),
            in_specs=[
                pl.BlockSpec((None, C, tile_hw), lambda b, t: (b, 0, t)),
                pl.BlockSpec((None, 1, tile_hw), lambda b, t: (b, 0, t)),
            ],
            out_specs=(
                pl.BlockSpec((None, None, C, 1), lambda b, t: (b, t, 0, 0)),
                pl.BlockSpec((None, None, C, 1), lambda b, t: (b, t, 0, 0)),
            ),
        ),
        compiler_params=pltpu.CompilerParams(
            dimension_semantics=("parallel", "parallel"),
            vmem_limit_bytes=vmem_limit),
        cost_estimate=cost,
    )(logits3, labels)

    # Tiny O(B * num_tiles * C) finalization in plain JAX.
    inter_c = jnp.sum(inter[..., 0], axis=(0, 1))   # (C,)
    card_c = jnp.sum(card[..., 0], axis=(0, 1))     # (C,)
    union = card_c - inter_c
    return 1.0 - jnp.mean(inter_c / (union + eps))


def jacc_loss_ref(logits, true, eps=1e-7):
    """Pure-JAX reference of the PyTorch forward (both branches)."""
    C = logits.shape[1]
    t = true.reshape(true.shape[0], *logits.shape[2:])
    if C == 1:
        oh = jax.nn.one_hot(t, 2, dtype=logits.dtype)        # [B,H,W,2]
        oh = jnp.transpose(oh, (0, 3, 1, 2))                  # [B,2,H,W]
        oh = jnp.concatenate([oh[:, 1:2], oh[:, 0:1]], axis=1)
        pos = jax.nn.sigmoid(logits)
        probas = jnp.concatenate([pos, 1.0 - pos], axis=1)
    else:
        probas = jax.nn.softmax(logits, axis=1)
        oh = jax.nn.one_hot(t, C, dtype=logits.dtype)
        oh = jnp.transpose(oh, (0, 3, 1, 2))
    dims = (0, 2, 3)
    inter = jnp.sum(probas * oh, dims)
    card = jnp.sum(probas + oh, dims)
    union = card - inter
    return 1.0 - jnp.mean(inter / (union + eps))


if __name__ == "__main__":
    key = jax.random.PRNGKey(0)
    k1, k2, k3, k4, k5, k6 = jax.random.split(key, 6)

    # Multi-class (softmax) path.
    B, C, H, W = 2, 4, 16, 16
    logits = jax.random.normal(k1, (B, C, H, W), dtype=jnp.float32)
    true = jax.random.randint(k2, (B, 1, H, W), 0, C, dtype=jnp.int32)
    out = jax.block_until_ready(jacc_loss(logits, true))
    ref = jacc_loss_ref(logits, true)
    assert jnp.allclose(out, ref, atol=1e-5, rtol=1e-5), (out, ref)

    # Ragged-tile path (force tile 128 on HW = 200 -> partial last tile).
    Hr, Wr = 10, 20
    logits_r = jax.random.normal(k3, (B, C, Hr, Wr), dtype=jnp.float32)
    true_r = jax.random.randint(k4, (B, 1, Hr, Wr), 0, C, dtype=jnp.int32)
    out_r = jax.block_until_ready(jacc_loss(logits_r, true_r, tile_hw=128))
    ref_r = jacc_loss_ref(logits_r, true_r)
    assert jnp.allclose(out_r, ref_r, atol=1e-5, rtol=1e-5), (out_r, ref_r)

    # Binary (num_classes == 1, sigmoid) path.
    logits_b = jax.random.normal(k5, (2, 1, 8, 8), dtype=jnp.float32)
    true_b = jax.random.randint(k6, (2, 1, 8, 8), 0, 2, dtype=jnp.int32)
    out_b = jax.block_until_ready(jacc_loss(logits_b, true_b))
    ref_b = jacc_loss_ref(logits_b, true_b)
    assert jnp.allclose(out_b, ref_b, atol=1e-5, rtol=1e-5), (out_b, ref_b)

    print("KERNEL_OK")
</pallas_src>

<mosaic_0001>
module attributes {stable_mosaic.version = 11 : i64} {
  func.func @_jacc_kernel(%arg0: i32, %arg1: i32, %arg2: memref<1x4x256xf32, #tpu.memory_space<vmem>>, %arg3: memref<1x1x256xi32, #tpu.memory_space<vmem>>, %arg4: memref<1x1x4x1xf32, #tpu.memory_space<vmem>>, %arg5: memref<1x1x4x1xf32, #tpu.memory_space<vmem>>) attributes {dimension_semantics = [#tpu.dimension_semantics<parallel>, #tpu.dimension_semantics<parallel>], iteration_bounds = array<i64: 2, 1>, scalar_prefetch = 0 : i64, scratch_operands = 0 : i64, tpu.core_type = #tpu.core_type<tc>, window_params = [{transform_indices = @transform_0, window_bounds = array<i64: 1, 4, 256>}, {transform_indices = @transform_1, window_bounds = array<i64: 1, 1, 256>}, {transform_indices = @transform_2, window_bounds = array<i64: 1, 1, 4, 1>}, {transform_indices = @transform_3, window_bounds = array<i64: 1, 1, 4, 1>}]} {
    %c0 = arith.constant 0 : index
    %c0_0 = arith.constant 0 : index
    %c0_1 = arith.constant 0 : index
    %0 = vector.load %arg2[%c0, %c0_0, %c0_1] : memref<1x4x256xf32, #tpu.memory_space<vmem>>, vector<1x4x256xf32>
    %1 = vector.shape_cast %0 : vector<1x4x256xf32> to vector<4x256xf32>
    %c0_2 = arith.constant 0 : index
    %c0_3 = arith.constant 0 : index
    %c0_4 = arith.constant 0 : index
    %2 = vector.load %arg3[%c0_2, %c0_3, %c0_4] : memref<1x1x256xi32, #tpu.memory_space<vmem>>, vector<1x1x256xi32>
    %3 = vector.shape_cast %2 : vector<1x1x256xi32> to vector<1x256xi32>
    %4 = tpu.iota {dimensions = array<i32: 0>} : vector<4x1xi32>
    %cst = arith.constant dense<0xFF800000> : vector<256xf32>
    %5 = vector.multi_reduction <maximumf>, %1, %cst [0] : vector<4x256xf32> to vector<256xf32>
    %6 = vector.shape_cast %5 : vector<256xf32> to vector<1x256xf32>
    %7 = vector.broadcast %6 : vector<1x256xf32> to vector<4x256xf32>
    %8 = arith.subf %1, %7 : vector<4x256xf32>
    %9 = math.exp %8 : vector<4x256xf32>
    %cst_5 = arith.constant dense<0.000000e+00> : vector<256xf32>
    %10 = vector.multi_reduction <add>, %9, %cst_5 [0] : vector<4x256xf32> to vector<256xf32>
    %11 = vector.shape_cast %10 : vector<256xf32> to vector<1x256xf32>
    %cst_6 = arith.constant 1.000000e+00 : f32
    %12 = vector.broadcast %cst_6 : f32 to vector<1x256xf32>
    %13 = arith.divf %12, %11 : vector<1x256xf32>
    %14 = vector.broadcast %13 : vector<1x256xf32> to vector<4x256xf32>
    %15 = arith.mulf %9, %14 : vector<4x256xf32>
    %16 = vector.broadcast %4 : vector<4x1xi32> to vector<4x256xi32>
    %17 = vector.broadcast %3 : vector<1x256xi32> to vector<4x256xi32>
    %18 = arith.cmpi eq, %16, %17 : vector<4x256xi32>
    %cst_7 = arith.constant 0.000000e+00 : f32
    %19 = vector.broadcast %cst_7 : f32 to vector<4x256xf32>
    %20 = arith.select %18, %15, %19 : vector<4x256xi1>, vector<4x256xf32>
    %cst_8 = arith.constant dense<0.000000e+00> : vector<4xf32>
    %21 = vector.multi_reduction <add>, %20, %cst_8 [1] : vector<4x256xf32> to vector<4xf32>
    %22 = vector.shape_cast %21 : vector<4xf32> to vector<4x1xf32>
    %cst_9 = arith.constant 1.000000e+00 : f32
    %23 = vector.broadcast %cst_9 : f32 to vector<4x256xf32>
    %24 = arith.addf %15, %23 : vector<4x256xf32>
    %25 = arith.select %18, %24, %15 : vector<4x256xi1>, vector<4x256xf32>
    %cst_10 = arith.constant dense<0.000000e+00> : vector<4xf32>
    %26 = vector.multi_reduction <add>, %25, %cst_10 [1] : vector<4x256xf32> to vector<4xf32>
    %27 = vector.shape_cast %26 : vector<4xf32> to vector<4x1xf32>
    %c0_11 = arith.constant 0 : index
    %c0_12 = arith.constant 0 : index
    %c0_13 = arith.constant 0 : index
    %c0_14 = arith.constant 0 : index
    %28 = vector.load %arg4[%c0_11, %c0_12, %c0_13, %c0_14] : memref<1x1x4x1xf32, #tpu.memory_space<vmem>>, vector<1x1x4x1xf32>
    %29 = vector.shape_cast %28 : vector<1x1x4x1xf32> to vector<4x1xf32>
    %30 = vector.shape_cast %22 : vector<4x1xf32> to vector<1x1x4x1xf32>
    tpu.vector_store %arg4[%c0_11, %c0_12, %c0_13, %c0_14], %30 {strides = array<i32>} : memref<1x1x4x1xf32, #tpu.memory_space<vmem>>, vector<1x1x4x1xf32>,
    %c0_15 = arith.constant 0 : index
    %c0_16 = arith.constant 0 : index
    %c0_17 = arith.constant 0 : index
    %c0_18 = arith.constant 0 : index
    %31 = vector.load %arg5[%c0_15, %c0_16, %c0_17, %c0_18] : memref<1x1x4x1xf32, #tpu.memory_space<vmem>>, vector<1x1x4x1xf32>
    %32 = vector.shape_cast %31 : vector<1x1x4x1xf32> to vector<4x1xf32>
    %33 = vector.shape_cast %27 : vector<4x1xf32> to vector<1x1x4x1xf32>
    tpu.vector_store %arg5[%c0_15, %c0_16, %c0_17, %c0_18], %33 {strides = array<i32>} : memref<1x1x4x1xf32, #tpu.memory_space<vmem>>, vector<1x1x4x1xf32>,
    return
  }
  func.func @transform_0(%arg0: i32, %arg1: i32) -> (i32, i32, i32) {
    %c0_i32 = arith.constant 0 : i32
    %c0_i32_0 = arith.constant 0 : i32
    return %arg0, %c0_i32, %arg1 : i32, i32, i32
  }
  func.func @transform_1(%arg0: i32, %arg1: i32) -> (i32, i32, i32) {
    %c0_i32 = arith.constant 0 : i32
    %c0_i32_0 = arith.constant 0 : i32
    return %arg0, %c0_i32, %arg1 : i32, i32, i32
  }
  func.func @transform_2(%arg0: i32, %arg1: i32) -> (i32, i32, i32, i32) {
    %c0_i32 = arith.constant 0 : i32
    %c0_i32_0 = arith.constant 0 : i32
    %c0_i32_1 = arith.constant 0 : i32
    return %arg0, %arg1, %c0_i32, %c0_i32_0 : i32, i32, i32, i32
  }
  func.func @transform_3(%arg0: i32, %arg1: i32) -> (i32, i32, i32, i32) {
    %c0_i32 = arith.constant 0 : i32
    %c0_i32_0 = arith.constant 0 : i32
    %c0_i32_1 = arith.constant 0 : i32
    return %arg0, %arg1, %c0_i32, %c0_i32_0 : i32, i32, i32, i32
  }
}

</mosaic_0001>

<llo_original>
// kernel: tpu_custom_call.1
$region0: #{tpu_custom_call.1}
  #allocation0 [shape = 'u32[]', space=smem, size = 0x4, offset = 0x4, fixed_abs, tag = 'smem constant byte address 0x4 - core index']
  #allocation1 [shape = 'u32[144,128]{1,0:T(1,128)}', space=vmem, size = 0x12000, scoped, tag = 'internal scratch']
  %s0 = inlined_call_operand.hbm [shape: f32[2,4,256], index: 0, kind: input, shape index: {}]
  %s1 = inlined_call_operand.hbm [shape: s32[2,1,256], index: 1, kind: input, shape index: {}]
  %s2 = inlined_call_operand.vmem [shape: f32[2,1,4,1], index: 2, kind: output, shape index: {0}]
  %s3 = inlined_call_operand.vmem [shape: f32[2,1,4,1], index: 3, kind: output, shape index: {1}]
  %4 = xla_tuple %s2, %s3
  %s5 = sld [smem:[#allocation0]]
  $region57: #{tpu_custom_call.1} parent=0
    _
  %s7 = ssub.s32 1, %s5
  %s8 = scalar_select 0, %s7, %s5
  $region1: #{tpu_custom_call.1} parent=0
    #allocation2 [shape = 'u8[8192]{0}', space=vmem, size = 0x2000, scoped, tag = 'input window, operand 0']
    #allocation3 [shape = 's32[2]{0}', space=sflag, size = 0x8, scoped, tag = 'scoped memory for tpu_custom_call.1']
    #allocation4 [shape = 'u8[2048]{0}', space=vmem, size = 0x800, scoped, tag = 'input window, operand 1']
    #allocation5 [shape = 's32[2]{0}', space=sflag, size = 0x8, scoped, tag = 'scoped memory for tpu_custom_call.1']
    %9 = vsyncpa [#allocation3], 0
    %s10 = scalar_lea.sflag [#allocation3], 1
    %11 = vsyncpa %s10, 0
    %12 = vsyncpa [#allocation5], 0
    %s13 = scalar_lea.sflag [#allocation5], 1
    %14 = vsyncpa %s13, 0
    loop: start=0, step=1, limit=4
    $region2: #{tpu_custom_call.1} parent=1 // loop_pre_header
      _
    $region3: #{tpu_custom_call.1} parent=1 // loop_header
      %s16 = sphi 0, %s20
      %p17 = scmp.ge.s32.totalorder %s16, 4
      %s23 = sphi 0, %s35
      %s24 = sphi 0, %s31
      %s25 = sphi 0, %s23
      %s26 = sphi 0, %s24
      %s27 = sphi 0, %s25
      %s28 = sphi 0, %s26
      %s40 = sphi 0, %s42
      %s43 = sphi 0, %s40
      %s44 = sphi 0, %s43
      %s60 = sphi 0, %s44
      %s68 = sphi 0, %s70
      %s71 = sphi 0, %s68
      %s72 = sphi 0, %s71
      %s88 = sphi 0, %s72
      %s96 = sphi 0, %s98
      %s99 = sphi 0, %s96
      %s100 = sphi 0, %s99
      %s116 = sphi 0, %s100
      %s124 = sphi 0, %s126
      %s127 = sphi 0, %s124
      %s128 = sphi 0, %s127
      %s144 = sphi 0, %s128
    $region4: #{tpu_custom_call.1} parent=1 // loop_header_branch
      %19 = sbr.rel (%p17) target = $region8
    $region5: #{tpu_custom_call.1} parent=1 // loop_body
      %s21 = ssub.s32 %s16, 1
      %s22 = ssub.s32 %s16, 2
      %s29 = sadd.s32 1, %s24
      %p30 = scmp.ge.s32.totalorder %s29, 1
      %s31 = scalar_select %p30, 0, %s29
      %s32 = sadd.s32 1, %s23
      %s33 = scalar_select %p30, %s32, %s23
      %p34 = scmp.ge.s32.totalorder %s33, 2
      %s35 = scalar_select %p34, 0, %s33
      %s36 = ssub.s32 %s23, %s35
      %s37 = ssub.s32 %s24, %s31
      %s38 = sor.u32 %s36, %s37
      %p39 = scmp.eq.s32.totalorder %s38, 0
      %s41 = sadd.s32 %s40, 1
      %s42 = scalar_select %p39, %s40, %s41
      %p45 = pneg %p39
      %p46 = scmp.eq.s32.totalorder %s16, 1
      %p47 = por %p45, %p46
      %p48 = scmp.ne.s32.totalorder %s40, %s43
      %p49 = scmp.eq.s32.totalorder %s16, 0
      %p50 = por %p48, %p49
      %p51 = scmp.ne.s32.totalorder %s40, %s43
      %p52 = scmp.eq.s32.totalorder %s21, 1
      %p53 = por %p51, %p52
      %p54 = scmp.ne.s32.totalorder %s43, %s44
      %p55 = scmp.eq.s32.totalorder %s21, 0
      %p56 = por %p54, %p55
      %p57 = scmp.ne.s32.totalorder %s43, %s44
      %p58 = scmp.eq.s32.totalorder %s22, 1
      %p59 = por %p57, %p58
      %p61 = scmp.ne.s32.totalorder %s44, %s60
      %p62 = scmp.eq.s32.totalorder %s22, 0
      %p63 = por %p61, %p62
      %s64 = ssub.s32 %s23, %s35
      %s65 = ssub.s32 %s24, %s31
      %s66 = sor.u32 %s64, %s65
      %p67 = scmp.eq.s32.totalorder %s66, 0
      %s69 = sadd.s32 %s68, 1
      %s70 = scalar_select %p67, %s68, %s69
      %p73 = pneg %p67
      %p74 = scmp.eq.s32.totalorder %s16, 1
      %p75 = por %p73, %p74
      %p76 = scmp.ne.s32.totalorder %s68, %s71
      %p77 = scmp.eq.s32.totalorder %s16, 0
      %p78 = por %p76, %p77
      %p79 = scmp.ne.s32.totalorder %s68, %s71
      %p80 = scmp.eq.s32.totalorder %s21, 1
      %p81 = por %p79, %p80
      %p82 = scmp.ne.s32.totalorder %s71, %s72
      %p83 = scmp.eq.s32.totalorder %s21, 0
      %p84 = por %p82, %p83
      %p85 = scmp.ne.s32.totalorder %s71, %s72
      %p86 = scmp.eq.s32.totalorder %s22, 1
      %p87 = por %p85, %p86
      %p89 = scmp.ne.s32.totalorder %s72, %s88
      %p90 = scmp.eq.s32.totalorder %s22, 0
      %p91 = por %p89, %p90
      %s92 = ssub.s32 %s23, %s35
      %s93 = ssub.s32 %s24, %s31
      %s94 = sor.u32 %s92, %s93
      %p95 = scmp.eq.s32.totalorder %s94, 0
      %s97 = sadd.s32 %s96, 1
      %s98 = scalar_select %p95, %s96, %s97
      %p101 = pneg %p95
      %p102 = scmp.eq.s32.totalorder %s16, 1
      %p103 = por %p101, %p102
      %p104 = scmp.ne.s32.totalorder %s96, %s99
      %p105 = scmp.eq.s32.totalorder %s16, 0
      %p106 = por %p104, %p105
      %p107 = scmp.ne.s32.totalorder %s96, %s99
      %p108 = scmp.eq.s32.totalorder %s21, 1
      %p109 = por %p107, %p108
      %p110 = scmp.ne.s32.totalorder %s99, %s100
      %p111 = scmp.eq.s32.totalorder %s21, 0
      %p112 = por %p110, %p111
      %p113 = scmp.ne.s32.totalorder %s99, %s100
      %p114 = scmp.eq.s32.totalorder %s22, 1
      %p115 = por %p113, %p114
      %p117 = scmp.ne.s32.totalorder %s100, %s116
      %p118 = scmp.eq.s32.totalorder %s22, 0
      %p119 = por %p117, %p118
      %s120 = ssub.s32 %s23, %s35
      %s121 = ssub.s32 %s24, %s31
      %s122 = sor.u32 %s120, %s121
      %p123 = scmp.eq.s32.totalorder %s122, 0
      %s125 = sadd.s32 %s124, 1
      %s126 = scalar_select %p123, %s124, %s125
      %p129 = pneg %p123
      %p130 = scmp.eq.s32.totalorder %s16, 1
      %p131 = por %p129, %p130
      %p132 = scmp.ne.s32.totalorder %s124, %s127
      %p133 = scmp.eq.s32.totalorder %s16, 0
      %p134 = por %p132, %p133
      %p135 = scmp.ne.s32.totalorder %s124, %s127
      %p136 = scmp.eq.s32.totalorder %s21, 1
      %p137 = por %p135, %p136
      %p138 = scmp.ne.s32.totalorder %s127, %s128
      %p139 = scmp.eq.s32.totalorder %s21, 0
      %p140 = por %p138, %p139
      %p141 = scmp.ne.s32.totalorder %s127, %s128
      %p142 = scmp.eq.s32.totalorder %s22, 1
      %p143 = por %p141, %p142
      %p145 = scmp.ne.s32.totalorder %s128, %s144
      %p146 = scmp.eq.s32.totalorder %s22, 0
      %p147 = por %p145, %p146
      %p148 = scmp.le.s32.totalorder 1, %s16
      %p149 = scmp.lt.s32.totalorder %s16, 3
      %p150 = pnand %p148, %p149
      %p151 = pneg %p150
      // Predicated region
      $region9: #{tpu_custom_call.1} parent=5 // pred_check
        _
      $region10: #{tpu_custom_call.1} parent=5 // pred_check_branch
        %153 = sbr.rel (%p150) target = $region12
      $region11: #{tpu_custom_call.1} parent=5 // pred_region
        %s154 = ssub.s32 %s16, 1
      $region12: #{tpu_custom_call.1} parent=5 // pred_fallthru
        _
      %p155 = scmp.lt.s32.totalorder %s16, 2
      // Predicated region
      $region13: #{tpu_custom_call.1} parent=5 // pred_check
        %p156 = pneg %p155
      $region14: #{tpu_custom_call.1} parent=5 // pred_check_branch
        %158 = sbr.rel (%p156) target = $region16
      $region15: #{tpu_custom_call.1} parent=5 // pred_region
        // Predicated region
        $region17: #{tpu_custom_call.1} parent=15 // pred_check
          %p159 = pneg %p50
        $region18: #{tpu_custom_call.1} parent=15 // pred_check_branch
          %161 = sbr.rel (%p159) target = $region20
        $region19: #{tpu_custom_call.1} parent=15 // pred_region
          %s162 = sand.u32 %s40, 1
          %s163 = scalar_lea.sflag [#allocation3], %s162
          %s164 = sand.u32 %s40, 1
          %s165 = smul.addr %s164, 8
          %s166 = scalar_lea.vmem [#allocation2], %s165
          %s167 = smul.u32 2, %s24
          %s169 = ssub.s32 128, 128
          %170 = vsyncadd %s163, %s169
          %s171 = smul.addr %s23, 2
          %s172 = sadd.s32 %s167, %s171
          %s173 = smul.addr %s172, 64
          %s174 = scalar_lea.hbm %s0, %s173
          %s176 = sshll.u32 %s166, 4
          %s177 = int_to_ptr.vmem [resolvable:$true] %s176
          %179 = dma.hbm_to_vmem [thread:$0]  %s174, 128, %s177, %s163
        $region20: #{tpu_custom_call.1} parent=15 // pred_fallthru
          _
        // Predicated region
        $region21: #{tpu_custom_call.1} parent=15 // pred_check
          %p180 = pneg %p78
        $region22: #{tpu_custom_call.1} parent=15 // pred_check_branch
          %182 = sbr.rel (%p180) target = $region24
        $region23: #{tpu_custom_call.1} parent=15 // pred_region
          %s183 = sand.u32 %s68, 1
          %s184 = scalar_lea.sflag [#allocation5], %s183
          %s185 = sand.u32 %s68, 1
          %s186 = smul.addr %s185, 2
          %s187 = scalar_lea.vmem [#allocation4], %s186
          %s188 = smul.u32 2, %s24
          %s190 = ssub.s32 32, 32
          %191 = vsyncadd %s184, %s190
          %s192 = smul.addr %s23, 2
          %s193 = sadd.s32 %s188, %s192
          %s194 = smul.addr %s193, 16
          %s195 = scalar_lea.hbm %s1, %s194
          %s197 = sshll.u32 %s187, 4
          %s198 = int_to_ptr.vmem [resolvable:$true] %s197
          %200 = dma.hbm_to_vmem [thread:$0]  %s195, 32, %s198, %s184
        $region24: #{tpu_custom_call.1} parent=15 // pred_fallthru
          _
      $region16: #{tpu_custom_call.1} parent=5 // pred_fallthru
        _
      %p201 = scmp.le.s32.totalorder 1, %s16
      %p202 = scmp.lt.s32.totalorder %s16, 3
      %p203 = pnand %p201, %p202
      %p204 = pneg %p203
      // Predicated region
      $region25: #{tpu_custom_call.1} parent=5 // pred_check
        _
      $region26: #{tpu_custom_call.1} parent=5 // pred_check_branch
        %206 = sbr.rel (%p203) target = $region28
      $region27: #{tpu_custom_call.1} parent=5 // pred_region
        %s207 = ssub.s32 %s16, 1
        %s208 = sand.u32 %s43, 1
        %s209 = scalar_lea.sflag [#allocation3], %s208
        %s210 = sand.u32 %s43, 1
        %s211 = smul.addr %s210, 8
        %s212 = scalar_lea.vmem [#allocation2], %s211
        // Predicated region
        $region29: #{tpu_custom_call.1} parent=27 // pred_check
          %p213 = pneg %p56
        $region30: #{tpu_custom_call.1} parent=27 // pred_check_branch
          %215 = sbr.rel (%p213) target = $region32
        $region31: #{tpu_custom_call.1} parent=27 // pred_region
          %216 = dma.done %s209, 128
        $region32: #{tpu_custom_call.1} parent=27 // pred_fallthru
          _
        %s217 = sand.u32 %s71, 1
        %s218 = scalar_lea.sflag [#allocation5], %s217
        %s219 = sand.u32 %s71, 1
        %s220 = smul.addr %s219, 2
        %s221 = scalar_lea.vmem [#allocation4], %s220
        // Predicated region
        $region33: #{tpu_custom_call.1} parent=27 // pred_check
          %p222 = pneg %p84
        $region34: #{tpu_custom_call.1} parent=27 // pred_check_branch
          %224 = sbr.rel (%p222) target = $region36
        $region35: #{tpu_custom_call.1} parent=27 // pred_region
          %225 = dma.done %s218, 32
        $region36: #{tpu_custom_call.1} parent=27 // pred_fallthru
          _
        %s226 = sand.u32 %s43, 1
        %s227 = scalar_lea.sflag [#allocation3], %s226
        %s228 = sand.u32 %s43, 1
        %s229 = smul.addr %s228, 8
        %s230 = scalar_lea.vmem [#allocation2], %s229
        %p231 = pneg %p56
        %p232 = pneg %p53
        %s233 = sand.u32 %s71, 1
        %s234 = scalar_lea.sflag [#allocation5], %s233
        %s235 = sand.u32 %s71, 1
        %s236 = smul.addr %s235, 2
        %s237 = scalar_lea.vmem [#allocation4], %s236
        %p238 = pneg %p84
        %p239 = pneg %p81
        %p240 = pneg %p112
        %p241 = pneg %p109
        %p242 = scmp.lt.s32.totalorder %s25, 1
        %s243 = scalar_select %p242, %s25, 1
        %p244 = scmp.lt.s32.totalorder %s26, 0
        %s245 = scalar_select %p244, %s26, 0
        %s246 = sadd.s32 %s245, %s243
        %s247 = smul.addr %s246, 4
        %s248 = scalar_lea.vmem %s2, %s247
        %p249 = pneg %p140
        %p250 = pneg %p137
        %p251 = scmp.lt.s32.totalorder %s25, 1
        %s252 = scalar_select %p251, %s25, 1
        %p253 = scmp.lt.s32.totalorder %s26, 0
        %s254 = scalar_select %p253, %s26, 0
        %s255 = sadd.s32 %s254, %s252
        %s256 = smul.addr %s255, 4
        %s257 = scalar_lea.vmem %s3, %s256
        %s258 = smul.u32 2, %s26
        %s259 = smul.u32 2, %s26
        %p260 = scmp.lt.s32.totalorder %s25, 1
        %s261 = scalar_select %p260, %s25, 1
        %p262 = scmp.lt.s32.totalorder %s26, 0
        %s263 = scalar_select %p262, %s26, 0
        %s264 = sadd.s32 %s263, %s261
        %s265 = smul.addr %s264, 4
        %s266 = scalar_lea.vmem %s2, %s265
        %p267 = scmp.lt.s32.totalorder %s25, 1
        %s268 = scalar_select %p267, %s25, 1
        %p269 = scmp.lt.s32.totalorder %s26, 0
        %s270 = scalar_select %p269, %s26, 0
        %s271 = sadd.s32 %s270, %s268
        %s272 = smul.addr %s271, 4
        %s273 = scalar_lea.vmem %s3, %s272
        %v274 = vld [vmem:[%s212] sm:$0xff]
        %v275 = vld [vmem:[%s221] sm:$0x3]
        %v276 = vlaneseq
        %v277 = vshrl.u32 %v276, 7
        %v279 = vcombine.high %v274, %v274
        %vm281 = vcmask 1043456
        %v282 = vsel %vm281, %v274, -inf
        %v283 = vrot.slane %v282, 4
        %v284 = vmax.f32 %v282, %v283
        %v285 = vrot.slane %v284, 2
        %v286 = vmax.f32 %v284, %v285
        %v287 = vrot.slane %v286, 1
        %v288 = vmax.f32 %v286, %v287
        %v289 = vsel %vm281, %v279, -inf
        %v290 = vrot.slane %v289, 4
        %v291 = vmax.f32 %v289, %v290
        %v292 = vrot.slane %v291, 2
        %v293 = vmax.f32 %v291, %v292
        %v294 = vrot.slane %v293, 1
        %v295 = vmax.f32 %v293, %v294
        %v298 = vcombine.low %v288, %v295
        %v300 = vsub.f32 %v274, %v298
        %v301 = vmul.f32 %v300, 1.442695
        %v302 = vpow.pop %v301
        %v304 = vcombine.high %v302, %v302
        %v306 = vsel %vm281, %v302, 0.0
        %v307 = vrot.slane %v306, 4
        %v308 = vadd.f32 %v306, %v307
        %v309 = vrot.slane %v308, 2
        %v310 = vadd.f32 %v308, %v309
        %v311 = vrot.slane %v310, 1
        %v312 = vadd.f32 %v310, %v311
        %v313 = vsel %vm281, %v304, 0.0
        %v314 = vrot.slane %v313, 4
        %v315 = vadd.f32 %v313, %v314
        %v316 = vrot.slane %v315, 2
        %v317 = vadd.f32 %v315, %v316
        %v318 = vrot.slane %v317, 1
        %v319 = vadd.f32 %v317, %v318
        %v320 = vrcp.pop %v312
        %v321 = vmul.f32 1.0, %v320
        %v322 = vrcp.pop %v319
        %v323 = vmul.f32 1.0, %v322
        %v326 = vcombine.low %v321, %v323
        %v328 = vmul.f32 %v302, %v326
        %v329 = vlaneseq
        %v330 = vshrl.u32 %v329, 7
        %v331 = vsub.s32 0, %v330
        %v332 = vrot.slane %v275, %v331
        %v333 = vlaneseq
        %v334 = vshrl.u32 %v333, 7
        %v335 = vsub.s32 1, %v334
        %v336 = vrot.slane %v275, %v335
        %vm337 = vcmp.eq.s32.totalorder %v277, %v332
        %vm338 = vcmp.eq.s32.totalorder %v277, %v336
        %v340 = vcombine.high %v328, %v328
        %v342 = vsel %vm337, %v328, 0.0
        %v343 = vsel %vm338, %v340, 0.0
        %v344 = vsel %vm281, %v342, 0.0
        %v345 = vsel %vm281, %v343, 0.0
        %v346 = vadd.f32 %v344, %v345
        %347 = vadd.xlane.f32.xlu0 %v346
        %v348 = vpop.xlane.xlu0 %347
        %v349 = vadd.f32 %v328, 1.0
        %v351 = vcombine.high %v349, %v349
        %v353 = vsel %vm337, %v349, %v328
        %v354 = vsel %vm338, %v351, %v340
        %v355 = vsel %vm281, %v353, 0.0
        %v356 = vsel %vm281, %v354, 0.0
        %v357 = vadd.f32 %v355, %v356
        %358 = vadd.xlane.f32.xlu0 %v357
        %v359 = vpop.xlane.xlu0 %358
        %vm360 = vcmask 3072
        %361 = vst.msk [vmem:[%s266] sm:$0xf] %vm360, %v348
        %362 = vst.msk [vmem:[%s273] sm:$0xf] %vm360, %v359
        %p363 = scmp.lt.s32.totalorder %s25, 1
        %s364 = scalar_select %p363, %s25, 1
        %p365 = scmp.lt.s32.totalorder %s26, 0
        %s366 = scalar_select %p365, %s26, 0
        %s367 = sadd.s32 %s366, %s364
        %s368 = smul.addr %s367, 4
        %s369 = scalar_lea.vmem %s2, %s368
        %p370 = scmp.lt.s32.totalorder %s25, 1
        %s371 = scalar_select %p370, %s25, 1
        %p372 = scmp.lt.s32.totalorder %s26, 0
        %s373 = scalar_select %p372, %s26, 0
        %s374 = sadd.s32 %s373, %s371
        %s375 = smul.addr %s374, 4
        %s376 = scalar_lea.vmem %s3, %s375
        // Predicated region
        $region37: #{tpu_custom_call.1} parent=27 // pred_check
          %p377 = pneg %p109
        $region38: #{tpu_custom_call.1} parent=27 // pred_check_branch
          %379 = sbr.rel (%p377) target = $region40
        $region39: #{tpu_custom_call.1} parent=27 // pred_region
          _
        $region40: #{tpu_custom_call.1} parent=27 // pred_fallthru
          _
        // Predicated region
        $region41: #{tpu_custom_call.1} parent=27 // pred_check
          %p380 = pneg %p137
        $region42: #{tpu_custom_call.1} parent=27 // pred_check_branch
          %382 = sbr.rel (%p380) target = $region44
        $region43: #{tpu_custom_call.1} parent=27 // pred_region
          _
        $region44: #{tpu_custom_call.1} parent=27 // pred_fallthru
          _
      $region28: #{tpu_custom_call.1} parent=5 // pred_fallthru
        _
      %p383 = scmp.le.s32.totalorder 2, %s16
      // Predicated region
      $region45: #{tpu_custom_call.1} parent=5 // pred_check
        %p384 = pneg %p383
      $region46: #{tpu_custom_call.1} parent=5 // pred_check_branch
        %386 = sbr.rel (%p384) target = $region48
      $region47: #{tpu_custom_call.1} parent=5 // pred_region
        %s387 = ssub.s32 %s16, 2
        // Predicated region
        $region49: #{tpu_custom_call.1} parent=47 // pred_check
          %p388 = pneg %p115
        $region50: #{tpu_custom_call.1} parent=47 // pred_check_branch
          %390 = sbr.rel (%p388) target = $region52
        $region51: #{tpu_custom_call.1} parent=47 // pred_region
          %p391 = scmp.lt.s32.totalorder %s27, 1
          %s392 = scalar_select %p391, %s27, 1
          %p393 = scmp.lt.s32.totalorder %s28, 0
          %s394 = scalar_select %p393, %s28, 0
          %s395 = sadd.s32 %s394, %s392
          %s396 = smul.addr %s395, 4
          %s397 = scalar_lea.vmem %s2, %s396
        $region52: #{tpu_custom_call.1} parent=47 // pred_fallthru
          _
        // Predicated region
        $region53: #{tpu_custom_call.1} parent=47 // pred_check
          %p398 = pneg %p143
        $region54: #{tpu_custom_call.1} parent=47 // pred_check_branch
          %400 = sbr.rel (%p398) target = $region56
        $region55: #{tpu_custom_call.1} parent=47 // pred_region
          %p401 = scmp.lt.s32.totalorder %s27, 1
          %s402 = scalar_select %p401, %s27, 1
          %p403 = scmp.lt.s32.totalorder %s28, 0
          %s404 = scalar_select %p403, %s28, 0
          %s405 = sadd.s32 %s404, %s402
          %s406 = smul.addr %s405, 4
          %s407 = scalar_lea.vmem %s3, %s406
        $region56: #{tpu_custom_call.1} parent=47 // pred_fallthru
          _
      $region48: #{tpu_custom_call.1} parent=5 // pred_fallthru
        _
    $region6: #{tpu_custom_call.1} parent=1 // loop_footer
      %s20 = sadd.s32 1, %s16
    $region7: #{tpu_custom_call.1} parent=1 // loop_footer_branch
      %15 = sbr.rel target = $region3
    $region8: #{tpu_custom_call.1} parent=1 // loop_exit
      _
    %408 = vsyncpa [#allocation3], 1
    %s409 = scalar_lea.sflag [#allocation3], 1
    %410 = vsyncpa %s409, 1
    %411 = vsyncpa [#allocation5], 1
    %s412 = scalar_lea.sflag [#allocation5], 1
    %413 = vsyncpa %s412, 1

</llo_original>
